<compile_context>
chip_gen: v5e
topology: v5e:2x2
jax: 0.10.0
libtpu: 0.0.40
codegen_flags: <defaults>
</compile_context>

<pallas_src>
import jax
import jax.numpy as jnp
from jax.experimental import pallas as pl
from jax.experimental.pallas import tpu as pltpu


def _round_up(x, m):
    return (x + m - 1) // m * m


def _choose_batch_tile(B, sublane):
    """Pick (padded batch Bp, batch tile TB).

    - TB <= 128: matches the v5e 128x128 MXU M dim; fine on v6e/v7x too.
    - >= 2 tiles whenever the batch allows it so the ("parallel",) grid axis can
      shard across v7x's two TensorCores (costs ~0.35us of extra grid step on
      single-TC v5e/v6e, negligible).
    - No fixed 256-row round-up: padding never exceeds one tile's worth of rows.
    """
    Bp0 = _round_up(B, sublane)
    n_tiles = max(pl.cdiv(Bp0, 128), 2 if Bp0 >= 2 * sublane else 1)
    TB = min(128, _round_up(pl.cdiv(Bp0, n_tiles), sublane))
    Bp = _round_up(Bp0, TB)
    return Bp, TB


# ---------------------------------------------------------------------------
# Pallas kernel: o = relu(cls @ W + b) on one (TB, H) batch tile.
# ---------------------------------------------------------------------------
def cls_fc_relu_kernel(x_ref, w_ref, b_ref, o_ref):
    # x_ref : (TB, H)  CLS activations (bf16 or f32)
    # w_ref : (H, Cp)  fc weight, transposed, resident across the batch grid
    # b_ref : (1, Cp)  fc bias (f32)
    # o_ref : (TB, Cp) output codings
    y = jnp.dot(x_ref[...], w_ref[...], preferred_element_type=jnp.float32)
    y = y + b_ref[...]
    o_ref[...] = jnp.maximum(y, 0.0).astype(o_ref.dtype)


def text_encoder_head(cls, w_p, b_p, coding_dim, *,
                      single_buffer_weights=True, out_dtype=jnp.float32):
    """codings = relu(cls @ w_p + b_p)[:, :coding_dim] via one Pallas call.

    `w_p` / `b_p` must already be padded to a lane multiple of 128 and cast to
    the matmul input dtype (see prepare_text_encoder_params); that work is done
    once at parameter-init time, not per forward.
    """
    B, H = cls.shape
    Hw, Cp = w_p.shape
    assert Hw == H and Cp % 128 == 0 and coding_dim <= Cp

    in_dtype = w_p.dtype
    # bf16 packs 16 rows per sublane group -> pad batch to 16 (8 for f32).
    sublane = 16 if in_dtype == jnp.bfloat16 else 8
    Bp, TB = _choose_batch_tile(B, sublane)
    grid = (Bp // TB,)

    # Only the CLS rows are padded/cast (B*H elements), fused under jit.
    cls_p = jnp.zeros((Bp, H), in_dtype).at[:B, :].set(cls.astype(in_dtype))

    # Constant index_map operands never change across the grid: single-buffer
    # them so they don't burn 2x VMEM (matters once H / coding_dim scale up,
    # especially under v7x's 32 MiB scoped / 64 MiB physical VMEM).
    resident_kwargs = (
        dict(pipeline_mode=pl.Buffered(1)) if single_buffer_weights else {})

    itemsize = jnp.dtype(in_dtype).itemsize
    cost = pl.CostEstimate(
        flops=2 * Bp * H * Cp,
        transcendentals=0,
        bytes_accessed=(Bp * H + H * Cp) * itemsize
        + Cp * 4 + Bp * Cp * jnp.dtype(out_dtype).itemsize,
    )

    # TODO(synk): if H or Cp grows far beyond BERT-base (e.g. H>=1024 and
    # coding dims in the thousands on v7x), add a K grid axis over H with an
    # f32 VMEM accumulator and dimension_semantics=("parallel", "arbitrary")
    # so the resident weight block stays under the scoped-VMEM limit.
    out = pl.pallas_call(
        cls_fc_relu_kernel,
        out_shape=jax.ShapeDtypeStruct((Bp, Cp), out_dtype),
        grid_spec=pltpu.PrefetchScalarGridSpec(
            num_scalar_prefetch=0,
            grid=grid,
            in_specs=[
                pl.BlockSpec((TB, H), lambda i: (i, 0)),    # activation tile
                pl.BlockSpec((H, Cp), lambda i: (0, 0),     # weight: resident
                             **resident_kwargs),
                pl.BlockSpec((1, Cp), lambda i: (0, 0),     # bias: resident
                             **resident_kwargs),
            ],
            out_specs=pl.BlockSpec((TB, Cp), lambda i: (i, 0)),
        ),
        compiler_params=pltpu.CompilerParams(
            dimension_semantics=("parallel",)),             # shard batch (v7x 2 TCs)
        cost_estimate=cost,
    )(cls_p, w_p, b_p)

    return out[:B, :coding_dim]


# ---------------------------------------------------------------------------
# One-time parameter preparation (hoisted out of the per-call path).
# ---------------------------------------------------------------------------
def prepare_text_encoder_params(raw_params, *, use_bf16=True):
    """Pad the coding dim to a lane multiple of 128 and cast the matmul
    operands to bf16 (f32 bias, f32 MXU accumulation). Done once at init."""
    H, C = raw_params["fc_w_t"].shape
    Cp = _round_up(C, 128)
    in_dtype = jnp.bfloat16 if use_bf16 else raw_params["fc_w_t"].dtype
    w_p = jnp.zeros((H, Cp), in_dtype).at[:, :C].set(
        raw_params["fc_w_t"].astype(in_dtype))
    b_p = jnp.zeros((1, Cp), jnp.float32).at[0, :C].set(
        raw_params["fc_b"].astype(jnp.float32))
    return {
        "word_emb": raw_params["word_emb"],
        "pos_emb": raw_params["pos_emb"],
        "fc_w_p": w_p,
        "fc_b_p": b_p,
    }


# ---------------------------------------------------------------------------
# Deterministic stand-in for the frozen (no_grad) pretrained BERT model.
# ---------------------------------------------------------------------------
def synthetic_bert_last_hidden(tokens, word_emb, pos_emb):
    # TODO(synk): the pretrained `bert-base-chinese` transformer stack has no
    # in-script equivalent (checkpoint weights); this deterministic
    # embedding + layernorm stand-in only supplies `output[0]` with the right
    # shape/dtype so the TextEncoder head semantics can be exercised.
    B, S = tokens.shape
    h = word_emb[tokens] + pos_emb[jnp.arange(S)][None, :, :]     # (B, S, H)
    mu = jnp.mean(h, axis=-1, keepdims=True)
    var = jnp.var(h, axis=-1, keepdims=True)
    return (h - mu) / jnp.sqrt(var + 1e-12)


def text_encoder_forward(tokens, params, *, coding_dim, single_buffer_weights=True):
    last_hidden = synthetic_bert_last_hidden(
        tokens, params["word_emb"], params["pos_emb"])
    # CLS pooling: only the (B, H) CLS row reaches the Pallas call.
    cls = last_hidden[:, 0, :]
    return text_encoder_head(cls, params["fc_w_p"], params["fc_b_p"], coding_dim,
                             single_buffer_weights=single_buffer_weights)


# ---------------------------------------------------------------------------
if __name__ == "__main__":
    # Small shapes consistent with the module's forward:
    #   tokens (B, S) int32 -> BERT hidden (B, S, H) -> codings (B, coding_dim)
    B, S, H, CODING_DIM, VOCAB = 2, 8, 128, 64, 100

    key = jax.random.PRNGKey(0)
    k_tok, k_we, k_pe, k_w, k_b = jax.random.split(key, 5)

    tokens = jax.random.randint(k_tok, (B, S), 0, VOCAB, dtype=jnp.int32)

    raw_params = {
        "word_emb": jax.random.normal(k_we, (VOCAB, H), jnp.float32) * 0.02,
        "pos_emb":  jax.random.normal(k_pe, (S, H), jnp.float32) * 0.02,
        # nn.Linear(H, CODING_DIM): weight (CODING_DIM, H), bias (CODING_DIM,)
        # stored transposed as (H, CODING_DIM) for the kernel's row-major matmul.
        "fc_w_t": jax.random.normal(k_w, (H, CODING_DIM), jnp.float32)
                  * (1.0 / jnp.sqrt(H)),
        "fc_b":   jax.random.normal(k_b, (CODING_DIM,), jnp.float32) * 0.01,
    }

    # One-time: pad + cast the Linear weight/bias (hoisted out of the forward).
    params = prepare_text_encoder_params(raw_params, use_bf16=True)

    fwd = jax.jit(text_encoder_forward,
                  static_argnames=("coding_dim", "single_buffer_weights"))
    try:
        codings = jax.block_until_ready(
            fwd(tokens, params, coding_dim=CODING_DIM, single_buffer_weights=True))
    except Exception:
        # Graceful degradation: if this Pallas build does not accept per-operand
        # buffer counts (pl.Buffered(1)) on the top-level grid, fall back to the
        # default double-buffered resident weight/bias.
        codings = jax.block_until_ready(
            fwd(tokens, params, coding_dim=CODING_DIM, single_buffer_weights=False))

    # Pure-JAX references for the Pallas-covered head.
    last_hidden = synthetic_bert_last_hidden(
        tokens, raw_params["word_emb"], raw_params["pos_emb"])
    cls = last_hidden[:, 0, :]
    # Same bf16-input / f32-accumulate path as the kernel.
    ref_bf16 = jnp.maximum(
        jnp.dot(cls.astype(jnp.bfloat16),
                raw_params["fc_w_t"].astype(jnp.bfloat16),
                preferred_element_type=jnp.float32) + raw_params["fc_b"], 0.0)
    # Original module's full-f32 semantics (loose tolerance vs bf16 MXU path).
    ref_f32 = jnp.maximum(cls @ raw_params["fc_w_t"] + raw_params["fc_b"], 0.0)

    assert codings.shape == (B, CODING_DIM)
    assert codings.dtype == jnp.float32
    assert jnp.allclose(codings, ref_bf16, atol=1e-3, rtol=1e-3)
    assert jnp.allclose(codings, ref_f32, atol=5e-2, rtol=5e-2)

    print("KERNEL_OK")
</pallas_src>

<mosaic_0001>
module attributes {stable_mosaic.version = 11 : i64} {
  func.func @cls_fc_relu_kernel(%arg0: i32, %arg1: memref<16x128xbf16, #tpu.memory_space<vmem>>, %arg2: memref<128x128xbf16, #tpu.memory_space<vmem>>, %arg3: memref<1x128xf32, #tpu.memory_space<vmem>>, %arg4: memref<16x128xf32, #tpu.memory_space<vmem>>) attributes {dimension_semantics = [#tpu.dimension_semantics<parallel>], iteration_bounds = array<i64: 1>, scalar_prefetch = 0 : i64, scratch_operands = 0 : i64, tpu.core_type = #tpu.core_type<tc>, window_params = [{transform_indices = @transform_0, window_bounds = array<i64: 16, 128>}, {pipeline_mode = #tpu.pipeline_mode<synchronous>, transform_indices = @transform_1, window_bounds = array<i64: 128, 128>}, {pipeline_mode = #tpu.pipeline_mode<synchronous>, transform_indices = @transform_2, window_bounds = array<i64: 1, 128>}, {transform_indices = @transform_3, window_bounds = array<i64: 16, 128>}]} {
    %c0 = arith.constant 0 : index
    %c0_0 = arith.constant 0 : index
    %0 = vector.load %arg1[%c0, %c0_0] : memref<16x128xbf16, #tpu.memory_space<vmem>>, vector<16x128xbf16>
    %c0_1 = arith.constant 0 : index
    %c0_2 = arith.constant 0 : index
    %1 = vector.load %arg2[%c0_1, %c0_2] : memref<128x128xbf16, #tpu.memory_space<vmem>>, vector<128x128xbf16>
    %cst = arith.constant dense<0.000000e+00> : vector<16x128xf32>
    %2 = tpu.matmul %0, %1, %cst {dimension_numbers = #tpu.dot_dimension_numbers<[1], [0], [0], [1], [0, 0, 1, 1], [], []>} : vector<16x128xbf16>, vector<128x128xbf16>, vector<16x128xf32> -> vector<16x128xf32>
    %c0_3 = arith.constant 0 : index
    %c0_4 = arith.constant 0 : index
    %3 = vector.load %arg3[%c0_3, %c0_4] : memref<1x128xf32, #tpu.memory_space<vmem>>, vector<1x128xf32>
    %4 = vector.broadcast %3 : vector<1x128xf32> to vector<16x128xf32>
    %5 = arith.addf %2, %4 : vector<16x128xf32>
    %cst_5 = arith.constant 0.000000e+00 : f32
    %6 = vector.broadcast %cst_5 : f32 to vector<16x128xf32>
    %7 = arith.maximumf %5, %6 : vector<16x128xf32>
    %c0_6 = arith.constant 0 : index
    %c0_7 = arith.constant 0 : index
    %8 = vector.load %arg4[%c0_6, %c0_7] : memref<16x128xf32, #tpu.memory_space<vmem>>, vector<16x128xf32>
    tpu.vector_store %arg4[%c0_6, %c0_7], %7 {strides = array<i32>} : memref<16x128xf32, #tpu.memory_space<vmem>>, vector<16x128xf32>,
    return
  }
  func.func @transform_0(%arg0: i32) -> (i32, i32) {
    %c0_i32 = arith.constant 0 : i32
    %c0_i32_0 = arith.constant 0 : i32
    return %arg0, %c0_i32 : i32, i32
  }
  func.func @transform_1(%arg0: i32) -> (i32, i32) {
    %c0_i32 = arith.constant 0 : i32
    %c0_i32_0 = arith.constant 0 : i32
    %c0_i32_1 = arith.constant 0 : i32
    return %c0_i32, %c0_i32_0 : i32, i32
  }
  func.func @transform_2(%arg0: i32) -> (i32, i32) {
    %c0_i32 = arith.constant 0 : i32
    %c0_i32_0 = arith.constant 0 : i32
    %c0_i32_1 = arith.constant 0 : i32
    return %c0_i32, %c0_i32_0 : i32, i32
  }
  func.func @transform_3(%arg0: i32) -> (i32, i32) {
    %c0_i32 = arith.constant 0 : i32
    %c0_i32_0 = arith.constant 0 : i32
    return %arg0, %c0_i32 : i32, i32
  }
}

module attributes {stable_mosaic.version = 11 : i64} {
  func.func @cls_fc_relu_kernel(%arg0: i32, %arg1: memref<16x128xbf16, #tpu.memory_space<vmem>>, %arg2: memref<128x128xbf16, #tpu.memory_space<vmem>>, %arg3: memref<1x128xf32, #tpu.memory_space<vmem>>, %arg4: memref<16x128xf32, #tpu.memory_space<vmem>>) attributes {dimension_semantics = [#tpu.dimension_semantics<parallel>], iteration_bounds = array<i64: 1>, scalar_prefetch = 0 : i64, scratch_operands = 0 : i64, tpu.core_type = #tpu.core_type<tc>, window_params = [{transform_indices = @transform_0, window_bounds = array<i64: 16, 128>}, {pipeline_mode = #tpu.pipeline_mode<synchronous>, transform_indices = @transform_1, window_bounds = array<i64: 128, 128>}, {pipeline_mode = #tpu.pipeline_mode<synchronous>, transform_indices = @transform_2, window_bounds = array<i64: 1, 128>}, {transform_indices = @transform_3, window_bounds = array<i64: 16, 128>}]} {
    %c0 = arith.constant 0 : index
    %c0_0 = arith.constant 0 : index
    %0 = vector.load %arg1[%c0, %c0_0] : memref<16x128xbf16, #tpu.memory_space<vmem>>, vector<16x128xbf16>
    %c0_1 = arith.constant 0 : index
    %c0_2 = arith.constant 0 : index
    %1 = vector.load %arg2[%c0_1, %c0_2] : memref<128x128xbf16, #tpu.memory_space<vmem>>, vector<128x128xbf16>
    %cst = arith.constant dense<0.000000e+00> : vector<16x128xf32>
    %2 = tpu.matmul %0, %1, %cst {dimension_numbers = #tpu.dot_dimension_numbers<[1], [0], [0], [1], [0, 0, 1, 1], [], []>} : vector<16x128xbf16>, vector<128x128xbf16>, vector<16x128xf32> -> vector<16x128xf32>
    %c0_3 = arith.constant 0 : index
    %c0_4 = arith.constant 0 : index
    %3 = vector.load %arg3[%c0_3, %c0_4] : memref<1x128xf32, #tpu.memory_space<vmem>>, vector<1x128xf32>
    %4 = vector.broadcast %3 : vector<1x128xf32> to vector<16x128xf32>
    %5 = arith.addf %2, %4 : vector<16x128xf32>
    %cst_5 = arith.constant 0.000000e+00 : f32
    %6 = vector.broadcast %cst_5 : f32 to vector<16x128xf32>
    %7 = arith.maximumf %5, %6 : vector<16x128xf32>
    %c0_6 = arith.constant 0 : index
    %c0_7 = arith.constant 0 : index
    %8 = vector.load %arg4[%c0_6, %c0_7] : memref<16x128xf32, #tpu.memory_space<vmem>>, vector<16x128xf32>
    tpu.vector_store %arg4[%c0_6, %c0_7], %7 {strides = array<i32>} : memref<16x128xf32, #tpu.memory_space<vmem>>, vector<16x128xf32>,
    return
  }
  func.func @transform_0(%arg0: i32) -> (i32, i32) {
    %c0_i32 = arith.constant 0 : i32
    %c0_i32_0 = arith.constant 0 : i32
    return %arg0, %c0_i32 : i32, i32
  }
  func.func @transform_1(%arg0: i32) -> (i32, i32) {
    %c0_i32 = arith.constant 0 : i32
    %c0_i32_0 = arith.constant 0 : i32
    %c0_i32_1 = arith.constant 0 : i32
    return %c0_i32, %c0_i32_0 : i32, i32
  }
  func.func @transform_2(%arg0: i32) -> (i32, i32) {
    %c0_i32 = arith.constant 0 : i32
    %c0_i32_0 = arith.constant 0 : i32
    %c0_i32_1 = arith.constant 0 : i32
    return %c0_i32, %c0_i32_0 : i32, i32
  }
  func.func @transform_3(%arg0: i32) -> (i32, i32) {
    %c0_i32 = arith.constant 0 : i32
    %c0_i32_0 = arith.constant 0 : i32
    return %arg0, %c0_i32 : i32, i32
  }
}

</mosaic_0001>

<llo_original>
// kernel: text_encoder_forward.1
$region0: #{text_encoder_forward.1}
  #allocation0 [shape = 'u32[]', space=smem, size = 0x4, offset = 0x4, fixed_abs, tag = 'smem constant byte address 0x4 - core index']
  #allocation1 [shape = 'u32[72,128]{1,0:T(1,128)}', space=vmem, size = 0x9000, scoped, tag = 'internal scratch']
  %s0 = inlined_call_operand.vmem [shape: bf16[16,128], index: 0, kind: input, shape index: {}]
  %s1 = inlined_call_operand.vmem [shape: bf16[128,128], index: 1, kind: input, shape index: {}]
  %s2 = inlined_call_operand.vmem [shape: f32[1,128], index: 2, kind: input, shape index: {}]
  %s3 = inlined_call_operand.vmem [shape: f32[16,128], index: 3, kind: output, shape index: {}]
  %s4 = sld [smem:[#allocation0]]
  $region22: #{text_encoder_forward.1} parent=0
    _
  %s6 = ssub.s32 1, %s4
  %s7 = scalar_select 0, %s6, %s4
  // Predicated region
  $region2: #{text_encoder_forward.1} parent=0 // pred_check
    _
  $region3: #{text_encoder_forward.1} parent=0 // pred_check_branch
    %9 = sbr.rel (0) target = $region5
  $region4: #{text_encoder_forward.1} parent=0 // pred_region
    _
  $region5: #{text_encoder_forward.1} parent=0 // pred_fallthru
    _
  // Predicated region
  $region6: #{text_encoder_forward.1} parent=0 // pred_check
    _
  $region7: #{text_encoder_forward.1} parent=0 // pred_check_branch
    %11 = sbr.rel (0) target = $region9
  $region8: #{text_encoder_forward.1} parent=0 // pred_region
    _
  $region9: #{text_encoder_forward.1} parent=0 // pred_fallthru
    _
  // Predicated region
  $region10: #{text_encoder_forward.1} parent=0 // pred_check
    _
  $region11: #{text_encoder_forward.1} parent=0 // pred_check_branch
    %13 = sbr.rel (0) target = $region13
  $region12: #{text_encoder_forward.1} parent=0 // pred_region
    _
  $region13: #{text_encoder_forward.1} parent=0 // pred_fallthru
    _
  %v14 = vld [vmem:[%s0] sm:$0xf]
  %v15 = vld [vmem:[%s0 + $0x4] sm:$0xf]
  %v16 = vld [vmem:[%s1] sm:$0xf]
  %v17 = vld [vmem:[%s1 + $0x4] sm:$0xf]
  %v18 = vld [vmem:[%s1 + $0x8] sm:$0xf]
  %v19 = vld [vmem:[%s1 + $0xc] sm:$0xf]
  %v20 = vld [vmem:[%s1 + $0x10] sm:$0xf]
  %v21 = vld [vmem:[%s1 + $0x14] sm:$0xf]
  %v22 = vld [vmem:[%s1 + $0x18] sm:$0xf]
  %v23 = vld [vmem:[%s1 + $0x1c] sm:$0xf]
  %v24 = vld [vmem:[%s1 + $0x20] sm:$0xf]
  %v25 = vld [vmem:[%s1 + $0x24] sm:$0xf]
  %v26 = vld [vmem:[%s1 + $0x28] sm:$0xf]
  %v27 = vld [vmem:[%s1 + $0x2c] sm:$0xf]
  %v28 = vld [vmem:[%s1 + $0x30] sm:$0xf]
  %v29 = vld [vmem:[%s1 + $0x34] sm:$0xf]
  %v30 = vld [vmem:[%s1 + $0x38] sm:$0xf]
  %v31 = vld [vmem:[%s1 + $0x3c] sm:$0xf]
  %v32 = vld [vmem:[%s2] sm:$0x1]
  %v34 = vperm.slane %v32, 0
  %v38 = vunpack.c.l.b16 %v14
  %v39 = vunpack.c.l.b16 %v15
  %v40 = vpack.c.b16 %v39, %v38
  %v58 = vunpack.c.l.b16 %v16
  %v59 = vunpack.c.l.b16 %v17
  %v60 = vunpack.c.l.b16 %v18
  %v61 = vunpack.c.l.b16 %v19
  %v62 = vunpack.c.l.b16 %v20
  %v63 = vunpack.c.l.b16 %v21
  %v64 = vunpack.c.l.b16 %v22
  %v65 = vunpack.c.l.b16 %v23
  %v66 = vunpack.c.l.b16 %v24
  %v67 = vunpack.c.l.b16 %v25
  %v68 = vunpack.c.l.b16 %v26
  %v69 = vunpack.c.l.b16 %v27
  %v70 = vunpack.c.l.b16 %v28
  %v71 = vunpack.c.l.b16 %v29
  %v72 = vunpack.c.l.b16 %v30
  %v73 = vunpack.c.l.b16 %v31
  %v74 = vpack.c.b16 %v59, %v58
  %v75 = vpack.c.b16 %v61, %v60
  %v76 = vpack.c.b16 %v63, %v62
  %v77 = vpack.c.b16 %v65, %v64
  %v78 = vpack.c.b16 %v67, %v66
  %v79 = vpack.c.b16 %v69, %v68
  %v80 = vpack.c.b16 %v71, %v70
  %v81 = vpack.c.b16 %v73, %v72
  %90 = vmatpush.bf16.msra.mxu0 %v81
  %91 = vmatpush.bf16.msra.mxu0 %v80
  %92 = vmatpush.bf16.msra.mxu0 %v79
  %93 = vmatpush.bf16.msra.mxu0 %v78
  %94 = vmatpush.bf16.msra.mxu0 %v77
  %95 = vmatpush.bf16.msra.mxu0 %v76
  %96 = vmatpush.bf16.msra.mxu0 %v75
  %97 = vmatpush.bf16.msra.mxu0 %v74
  %98 = vmatmul.bf16.gmra.mxu0 %v40
  %v99 = vpop.f32.mrf.mxu0
  %v100 = vadd.f32 %v34, %v99
  %v101 = vpop.f32.mrf.mxu0
  %v102 = vadd.f32 %v34, %v101
  %103 = vdwg.mxu0
  %v104 = vmax.f32 %v100, 0.0
  %v105 = vmax.f32 %v102, 0.0
  %106 = vst [vmem:[%s3] sm:$0xff] %v104
  %107 = vst [vmem:[%s3 + $0x8] sm:$0xff] %v105
  // Predicated region
  $region14: #{text_encoder_forward.1} parent=0 // pred_check
    _
  $region15: #{text_encoder_forward.1} parent=0 // pred_check_branch
    %109 = sbr.rel (0) target = $region17
  $region16: #{text_encoder_forward.1} parent=0 // pred_region
    _
  $region17: #{text_encoder_forward.1} parent=0 // pred_fallthru
    _
  // Predicated region
  $region18: #{text_encoder_forward.1} parent=0 // pred_check
    _
  $region19: #{text_encoder_forward.1} parent=0 // pred_check_branch
    %111 = sbr.rel (0) target = $region21
  $region20: #{text_encoder_forward.1} parent=0 // pred_region
    _
  $region21: #{text_encoder_forward.1} parent=0 // pred_fallthru
    _

// kernel: text_encoder_forward.1
$region0: #{text_encoder_forward.1}
  #allocation0 [shape = 'u32[]', space=smem, size = 0x4, offset = 0x4, fixed_abs, tag = 'smem constant byte address 0x4 - core index']
  #allocation1 [shape = 'u32[72,128]{1,0:T(1,128)}', space=vmem, size = 0x9000, scoped, tag = 'internal scratch']
  %s0 = inlined_call_operand.vmem [shape: bf16[16,128], index: 0, kind: input, shape index: {}]
  %s1 = inlined_call_operand.vmem [shape: bf16[128,128], index: 1, kind: input, shape index: {}]
  %s2 = inlined_call_operand.vmem [shape: f32[1,128], index: 2, kind: input, shape index: {}]
  %s3 = inlined_call_operand.vmem [shape: f32[16,128], index: 3, kind: output, shape index: {}]
  %s4 = sld [smem:[#allocation0]]
  $region22: #{text_encoder_forward.1} parent=0
    _
  %s6 = ssub.s32 1, %s4
  %s7 = scalar_select 0, %s6, %s4
  // Predicated region
  $region2: #{text_encoder_forward.1} parent=0 // pred_check
    _
  $region3: #{text_encoder_forward.1} parent=0 // pred_check_branch
    %9 = sbr.rel (0) target = $region5
  $region4: #{text_encoder_forward.1} parent=0 // pred_region
    _
  $region5: #{text_encoder_forward.1} parent=0 // pred_fallthru
    _
  // Predicated region
  $region6: #{text_encoder_forward.1} parent=0 // pred_check
    _
  $region7: #{text_encoder_forward.1} parent=0 // pred_check_branch
    %11 = sbr.rel (0) target = $region9
  $region8: #{text_encoder_forward.1} parent=0 // pred_region
    _
  $region9: #{text_encoder_forward.1} parent=0 // pred_fallthru
    _
  // Predicated region
  $region10: #{text_encoder_forward.1} parent=0 // pred_check
    _
  $region11: #{text_encoder_forward.1} parent=0 // pred_check_branch
    %13 = sbr.rel (0) target = $region13
  $region12: #{text_encoder_forward.1} parent=0 // pred_region
    _
  $region13: #{text_encoder_forward.1} parent=0 // pred_fallthru
    _
  %v14 = vld [vmem:[%s0] sm:$0xf]
  %v15 = vld [vmem:[%s0 + $0x4] sm:$0xf]
  %v16 = vld [vmem:[%s1] sm:$0xf]
  %v17 = vld [vmem:[%s1 + $0x4] sm:$0xf]
  %v18 = vld [vmem:[%s1 + $0x8] sm:$0xf]
  %v19 = vld [vmem:[%s1 + $0xc] sm:$0xf]
  %v20 = vld [vmem:[%s1 + $0x10] sm:$0xf]
  %v21 = vld [vmem:[%s1 + $0x14] sm:$0xf]
  %v22 = vld [vmem:[%s1 + $0x18] sm:$0xf]
  %v23 = vld [vmem:[%s1 + $0x1c] sm:$0xf]
  %v24 = vld [vmem:[%s1 + $0x20] sm:$0xf]
  %v25 = vld [vmem:[%s1 + $0x24] sm:$0xf]
  %v26 = vld [vmem:[%s1 + $0x28] sm:$0xf]
  %v27 = vld [vmem:[%s1 + $0x2c] sm:$0xf]
  %v28 = vld [vmem:[%s1 + $0x30] sm:$0xf]
  %v29 = vld [vmem:[%s1 + $0x34] sm:$0xf]
  %v30 = vld [vmem:[%s1 + $0x38] sm:$0xf]
  %v31 = vld [vmem:[%s1 + $0x3c] sm:$0xf]
  %v32 = vld [vmem:[%s2] sm:$0x1]
  %v34 = vperm.slane %v32, 0
  %v38 = vunpack.c.l.b16 %v14
  %v39 = vunpack.c.l.b16 %v15
  %v40 = vpack.c.b16 %v39, %v38
  %v58 = vunpack.c.l.b16 %v16
  %v59 = vunpack.c.l.b16 %v17
  %v60 = vunpack.c.l.b16 %v18
  %v61 = vunpack.c.l.b16 %v19
  %v62 = vunpack.c.l.b16 %v20
  %v63 = vunpack.c.l.b16 %v21
  %v64 = vunpack.c.l.b16 %v22
  %v65 = vunpack.c.l.b16 %v23
  %v66 = vunpack.c.l.b16 %v24
  %v67 = vunpack.c.l.b16 %v25
  %v68 = vunpack.c.l.b16 %v26
  %v69 = vunpack.c.l.b16 %v27
  %v70 = vunpack.c.l.b16 %v28
  %v71 = vunpack.c.l.b16 %v29
  %v72 = vunpack.c.l.b16 %v30
  %v73 = vunpack.c.l.b16 %v31
  %v74 = vpack.c.b16 %v59, %v58
  %v75 = vpack.c.b16 %v61, %v60
  %v76 = vpack.c.b16 %v63, %v62
  %v77 = vpack.c.b16 %v65, %v64
  %v78 = vpack.c.b16 %v67, %v66
  %v79 = vpack.c.b16 %v69, %v68
  %v80 = vpack.c.b16 %v71, %v70
  %v81 = vpack.c.b16 %v73, %v72
  %90 = vmatpush.bf16.msra.mxu0 %v81
  %91 = vmatpush.bf16.msra.mxu0 %v80
  %92 = vmatpush.bf16.msra.mxu0 %v79
  %93 = vmatpush.bf16.msra.mxu0 %v78
  %94 = vmatpush.bf16.msra.mxu0 %v77
  %95 = vmatpush.bf16.msra.mxu0 %v76
  %96 = vmatpush.bf16.msra.mxu0 %v75
  %97 = vmatpush.bf16.msra.mxu0 %v74
  %98 = vmatmul.bf16.gmra.mxu0 %v40
  %v99 = vpop.f32.mrf.mxu0
  %v100 = vadd.f32 %v34, %v99
  %v101 = vpop.f32.mrf.mxu0
  %v102 = vadd.f32 %v34, %v101
  %103 = vdwg.mxu0
  %v104 = vmax.f32 %v100, 0.0
  %v105 = vmax.f32 %v102, 0.0
  %106 = vst [vmem:[%s3] sm:$0xff] %v104
  %107 = vst [vmem:[%s3 + $0x8] sm:$0xff] %v105
  // Predicated region
  $region14: #{text_encoder_forward.1} parent=0 // pred_check
    _
  $region15: #{text_encoder_forward.1} parent=0 // pred_check_branch
    %109 = sbr.rel (0) target = $region17
  $region16: #{text_encoder_forward.1} parent=0 // pred_region
    _
  $region17: #{text_encoder_forward.1} parent=0 // pred_fallthru
    _
  // Predicated region
  $region18: #{text_encoder_forward.1} parent=0 // pred_check
    _
  $region19: #{text_encoder_forward.1} parent=0 // pred_check_branch
    %111 = sbr.rel (0) target = $region21
  $region20: #{text_encoder_forward.1} parent=0 // pred_region
    _
  $region21: #{text_encoder_forward.1} parent=0 // pred_fallthru
    _

</llo_original>
